<compile_context>
chip_gen: v7x
topology: tpu7x:2x2x1
jax: 0.10.0
libtpu: 0.0.40
codegen_flags: <defaults>
</compile_context>

<pallas_src>
import functools

import jax
import jax.numpy as jnp
from jax.experimental import pallas as pl
from jax.experimental.pallas import tpu as pltpu


# ----------------------------------------------------------------------------
# Pallas kernel
# ----------------------------------------------------------------------------
def _patch_embed_kernel(patch_ref, w_ref, pos_ref, out_ref):
    """One grid step: one (TM, K) tile of patch rows for one batch element.

    patch_ref : (TM, K)  flattened patches, row 0 of the array is the zero
                         class pseudo-patch (compute dtype, e.g. bf16)
    w_ref     : (K, E)   conv weight as a matmul operand (compute dtype)
    pos_ref   : (TM, E)  position table rows; row 0 holds cls + pos[0]
    out_ref   : (TM, E)  output embedding rows
    """
    acc = jnp.dot(patch_ref[...], w_ref[...],
                  preferred_element_type=jnp.float32)        # MXU, f32 accum
    out_ref[...] = (acc + pos_ref[...].astype(jnp.float32)).astype(out_ref.dtype)


# ----------------------------------------------------------------------------
# Helpers
# ----------------------------------------------------------------------------
def _patchify_nchw(x, patch_size):
    """(B, C, H, W) -> (B, num_patches, C*P*P), feature order (c, p, q) like Conv2d."""
    B, C, H, W = x.shape
    P = patch_size
    Hp, Wp = H // P, W // P
    x = x.reshape(B, C, Hp, P, Wp, P)
    x = x.transpose(0, 2, 4, 1, 3, 5)          # (B, Hp, Wp, C, P, P)
    return x.reshape(B, Hp * Wp, C * P * P)


def _choose_row_tile(n_rows, batch):
    """Row tile TM: multiple of 16 (bf16 sublane packing), capped at 256.

    Prefer >= 4 total grid tiles (>= 2 per v7x TensorCore) so both cores and
    the DMA pipeline stay busy, falling back to >= 2, while keeping tiles as
    large as possible to amortize the ~0.35 us/step pipeline overhead.
    """
    for t in (256, 128, 64, 32, 16):
        if t <= n_rows and pl.cdiv(n_rows, t) * batch >= 4:
            return t
    for t in (256, 128, 64, 32, 16):
        if t <= n_rows and pl.cdiv(n_rows, t) * batch >= 2:
            return t
    return 16


def prepare_params(conv_weight, class_embedding, position_embedding,
                   compute_dtype=jnp.bfloat16):
    """Hoisted weight prep (run once at weight-load time, not per forward).

    conv_weight        : (E, C, P, P) Conv2d weight (no bias)
    class_embedding    : (E,)
    position_embedding : (num_positions, E)
    returns (w_mat (K, E), pos_full (num_positions, E)) in compute_dtype, where
    pos_full row 0 already contains class_embedding + position_embedding[0].
    """
    E = conv_weight.shape[0]
    w_mat = conv_weight.reshape(E, -1).T.astype(compute_dtype)        # (K, E)
    cls_row = (class_embedding.astype(jnp.float32)
               + position_embedding[0].astype(jnp.float32))           # (E,)
    pos_full = jnp.concatenate(
        [cls_row[None, :], position_embedding[1:].astype(jnp.float32)],
        axis=0).astype(compute_dtype)                                  # (N+1, E)
    return w_mat, pos_full


# ----------------------------------------------------------------------------
# Forward wrapper
# ----------------------------------------------------------------------------
@functools.partial(jax.jit, static_argnames=("patch_size", "out_dtype"))
def clipseg_vision_embeddings(pixel_values, w_mat, pos_full, *, patch_size,
                              out_dtype=None):
    """pixel_values: (B, C, H, W) NCHW
       w_mat       : (K, E)   pre-transposed conv weight (K = C*P*P)
       pos_full    : (N+1, E) position table with the class row folded in
       returns (B, num_patches + 1, E)
    """
    B, C, H, W = pixel_values.shape
    P = patch_size
    K, E = w_mat.shape
    Hp, Wp = H // P, W // P
    N = Hp * Wp                                 # num_patches
    NP1 = N + 1

    if NP1 != pos_full.shape[0]:
        # TODO(synk): bicubic interpolate_pos_encoding for non-native resolutions.
        raise NotImplementedError(
            "interpolate_pos_encoding for H,W != image_size is not implemented")

    compute_dtype = w_mat.dtype
    if out_dtype is None:
        out_dtype = pixel_values.dtype

    # Cast to the compute dtype BEFORE the patchify transpose (halves the copy
    # if XLA does not fuse it into the kernel's input DMA).
    patches = _patchify_nchw(pixel_values.astype(compute_dtype), P)    # (B, N, K)

    # Row tiling: class pseudo-row + patch rows, padded to a multiple of TM so
    # every tile is full (unmasked stores).  Pad rows are sliced off below.
    TM = _choose_row_tile(NP1, B)
    num_row_tiles = pl.cdiv(NP1, TM)
    N_pad = num_row_tiles * TM
    pad_tail = N_pad - NP1

    patches_padded = jnp.pad(patches, ((0, 0), (1, pad_tail), (0, 0)))  # (B, N_pad, K)
    pos_padded = jnp.pad(pos_full, ((0, pad_tail), (0, 0)))             # (N_pad, E)

    cbytes = jnp.dtype(compute_dtype).itemsize
    obytes = jnp.dtype(out_dtype).itemsize

    # VMEM need: double-buffered patch/pos/out tiles + (double-buffered) weight.
    vmem_need = (2 * (TM * K + K * E + TM * E) * cbytes
                 + 2 * TM * E * obytes)
    vmem_limit = int(min(max(2 * vmem_need, 16 << 20), 64 << 20))

    out_padded = pl.pallas_call(
        _patch_embed_kernel,
        out_shape=jax.ShapeDtypeStruct((B, N_pad, E), out_dtype),
        # Row tiles OUTER, batch INNER: pos block index is constant along the
        # inner axis, so Pallas skips its re-DMA across batch elements.
        grid=(num_row_tiles, B),
        in_specs=[
            pl.BlockSpec((pl.Squeezed(), TM, K), lambda j, b: (b, j, 0)),
            pl.BlockSpec((K, E), lambda j, b: (0, 0)),
            pl.BlockSpec((TM, E), lambda j, b: (j, 0)),
        ],
        out_specs=pl.BlockSpec((pl.Squeezed(), TM, E), lambda j, b: (b, j, 0)),
        compiler_params=pltpu.CompilerParams(
            dimension_semantics=("parallel", "parallel"),
            vmem_limit_bytes=vmem_limit,
            allow_input_fusion=[True, False, False],
        ),
        cost_estimate=pl.CostEstimate(
            flops=2 * B * N_pad * K * E,
            transcendentals=0,
            bytes_accessed=(B * N_pad * K * cbytes + K * E * cbytes
                            + N_pad * E * cbytes + B * N_pad * E * obytes),
        ),
    )(patches_padded, w_mat, pos_padded)                               # (B, N_pad, E)

    if N_pad == NP1:
        return out_padded
    # A fused consumer could take the padded slab directly and skip this slice.
    return out_padded[:, :NP1, :]


# ----------------------------------------------------------------------------
# Plain-JAX f32 reference (module semantics) for correctness check
# ----------------------------------------------------------------------------
def _reference(pixel_values, conv_weight, class_embedding, position_embedding,
               patch_size):
    B = pixel_values.shape[0]
    E = conv_weight.shape[0]
    patches = _patchify_nchw(pixel_values, patch_size)              # (B, N, K)
    w_mat = conv_weight.reshape(E, -1).T                            # (K, E)
    patch_embeds = jnp.einsum("bnk,ke->bne", patches, w_mat)
    cls = jnp.broadcast_to(class_embedding.reshape(1, 1, E), (B, 1, E))
    emb = jnp.concatenate([cls, patch_embeds], axis=1)
    return emb + position_embedding[None, : emb.shape[1]]


# ----------------------------------------------------------------------------
# Main
# ----------------------------------------------------------------------------
if __name__ == "__main__":
    # Small synthetic config consistent with CLIPSegVisionConfig fields used.
    batch_size = 2
    num_channels = 4
    image_size = 16
    patch_size = 4
    hidden_size = 32
    num_patches = (image_size // patch_size) ** 2          # 16
    num_positions = num_patches + 1                        # 17

    key = jax.random.PRNGKey(0)
    k_px, k_w, k_cls, k_pos = jax.random.split(key, 4)

    pixel_values = jax.random.normal(
        k_px, (batch_size, num_channels, image_size, image_size), jnp.float32)
    # nn.Conv2d weight (E, C, P, P), no bias.
    conv_weight = jax.random.normal(
        k_w, (hidden_size, num_channels, patch_size, patch_size), jnp.float32
    ) * 0.02
    # nn.Parameter(torch.randn(embed_dim))
    class_embedding = jax.random.normal(k_cls, (hidden_size,), jnp.float32)
    # nn.Embedding(num_positions, embed_dim) weight
    position_embedding = jax.random.normal(
        k_pos, (num_positions, hidden_size), jnp.float32) * 0.02

    # Hoisted once (weight-load time), not per forward call.
    w_mat, pos_full = prepare_params(conv_weight, class_embedding,
                                     position_embedding)

    out = clipseg_vision_embeddings(pixel_values, w_mat, pos_full,
                                    patch_size=patch_size)
    out = jax.block_until_ready(out)

    ref = _reference(pixel_values, conv_weight, class_embedding,
                     position_embedding, patch_size)

    assert out.shape == (batch_size, num_positions, hidden_size), out.shape
    # bf16 matmul operands / bf16 position table with f32 accumulation vs
    # pure-f32 reference.
    assert jnp.allclose(out.astype(jnp.float32), ref, atol=5e-2, rtol=5e-2), \
        "mismatch vs reference"

    print("KERNEL_OK")
</pallas_src>

<mosaic_0001>
module attributes {stable_mosaic.version = 11 : i64} {
  func.func @_patch_embed_kernel(%arg0: i32, %arg1: i32, %arg2: memref<1x16x64xbf16, #tpu.memory_space<vmem>>, %arg3: memref<64x32xbf16, #tpu.memory_space<vmem>>, %arg4: memref<16x32xbf16, #tpu.memory_space<vmem>>, %arg5: memref<1x16x32xf32, #tpu.memory_space<vmem>>) attributes {dimension_semantics = [#tpu.dimension_semantics<parallel>, #tpu.dimension_semantics<parallel>], iteration_bounds = array<i64: 2, 2>, scalar_prefetch = 0 : i64, scratch_operands = 0 : i64, tpu.core_type = #tpu.core_type<tc>, window_params = [{transform_indices = @transform_0, window_bounds = array<i64: 1, 16, 64>}, {pipeline_mode = #tpu.pipeline_mode<synchronous>, transform_indices = @transform_1, window_bounds = array<i64: 64, 32>}, {transform_indices = @transform_2, window_bounds = array<i64: 16, 32>}, {transform_indices = @transform_3, window_bounds = array<i64: 1, 16, 32>}]} {
    %c0 = arith.constant 0 : index
    %c0_0 = arith.constant 0 : index
    %c0_1 = arith.constant 0 : index
    %0 = vector.load %arg2[%c0, %c0_0, %c0_1] : memref<1x16x64xbf16, #tpu.memory_space<vmem>>, vector<1x16x64xbf16>
    %1 = vector.shape_cast %0 : vector<1x16x64xbf16> to vector<16x64xbf16>
    %c0_2 = arith.constant 0 : index
    %c0_3 = arith.constant 0 : index
    %2 = vector.load %arg3[%c0_2, %c0_3] : memref<64x32xbf16, #tpu.memory_space<vmem>>, vector<64x32xbf16>
    %cst = arith.constant dense<0.000000e+00> : vector<16x32xf32>
    %3 = tpu.matmul %1, %2, %cst {dimension_numbers = #tpu.dot_dimension_numbers<[1], [0], [0], [1], [0, 0, 1, 1], [], []>} : vector<16x64xbf16>, vector<64x32xbf16>, vector<16x32xf32> -> vector<16x32xf32>
    %c0_4 = arith.constant 0 : index
    %c0_5 = arith.constant 0 : index
    %4 = vector.load %arg4[%c0_4, %c0_5] : memref<16x32xbf16, #tpu.memory_space<vmem>>, vector<16x32xbf16>
    %5 = arith.extf %4 : vector<16x32xbf16> to vector<16x32xf32>
    %6 = arith.addf %3, %5 : vector<16x32xf32>
    %c0_6 = arith.constant 0 : index
    %c0_7 = arith.constant 0 : index
    %c0_8 = arith.constant 0 : index
    %7 = vector.load %arg5[%c0_6, %c0_7, %c0_8] : memref<1x16x32xf32, #tpu.memory_space<vmem>>, vector<1x16x32xf32>
    %8 = vector.shape_cast %7 : vector<1x16x32xf32> to vector<16x32xf32>
    %9 = vector.shape_cast %6 : vector<16x32xf32> to vector<1x16x32xf32>
    tpu.vector_store %arg5[%c0_6, %c0_7, %c0_8], %9 {strides = array<i32>} : memref<1x16x32xf32, #tpu.memory_space<vmem>>, vector<1x16x32xf32>,
    return
  }
  func.func @transform_0(%arg0: i32, %arg1: i32) -> (i32, i32, i32) {
    %c0_i32 = arith.constant 0 : i32
    %c0_i32_0 = arith.constant 0 : i32
    return %arg1, %arg0, %c0_i32 : i32, i32, i32
  }
  func.func @transform_1(%arg0: i32, %arg1: i32) -> (i32, i32) {
    %c0_i32 = arith.constant 0 : i32
    %c0_i32_0 = arith.constant 0 : i32
    %c0_i32_1 = arith.constant 0 : i32
    return %c0_i32, %c0_i32_0 : i32, i32
  }
  func.func @transform_2(%arg0: i32, %arg1: i32) -> (i32, i32) {
    %c0_i32 = arith.constant 0 : i32
    %c0_i32_0 = arith.constant 0 : i32
    return %arg0, %c0_i32 : i32, i32
  }
  func.func @transform_3(%arg0: i32, %arg1: i32) -> (i32, i32, i32) {
    %c0_i32 = arith.constant 0 : i32
    %c0_i32_0 = arith.constant 0 : i32
    return %arg1, %arg0, %c0_i32 : i32, i32, i32
  }
}

</mosaic_0001>

<llo_original>
// kernel: clipseg_vision_embeddings.2
$region0: #{clipseg_vision_embeddings.2}
  #allocation0 [shape = 'u32[]', space=smem, size = 0x4, offset = 0x4, fixed_abs, tag = 'smem constant byte address 0x4 - core index']
  #allocation1 [shape = 'u32[144,128]{1,0:T(1,128)}', space=vmem, size = 0x12000, scoped, tag = 'internal scratch']
  #allocation2 [shape = 'u32[2048]{0}', space=vmem, size = 0x2000, scoped, tag = 'scoped memory for clipseg_vision_embeddings.2']
  #allocation3 [shape = 'u32[2048]{0}', space=vmem, size = 0x2000, scoped, tag = 'scoped memory for clipseg_vision_embeddings.2']
  #allocation4 [shape = 'u32[2048]{0}', space=vmem, size = 0x2000, scoped, tag = 'scoped memory for clipseg_vision_embeddings.2']
  #allocation5 [shape = 'u32[2048]{0}', space=vmem, size = 0x2000, scoped, tag = 'scoped memory for clipseg_vision_embeddings.2']
  #allocation6 [shape = 'u32[2048]{0}', space=vmem, size = 0x2000, scoped, tag = 'scoped memory for clipseg_vision_embeddings.2']
  %s0 = inlined_call_operand.vmem [shape: bf16[64,32], index: 0, kind: input, shape index: {}]
  %s1 = inlined_call_operand.vmem [shape: bf16[32,32], index: 1, kind: input, shape index: {}]
  %s2 = inlined_call_operand.vmem [shape: bf16[2,16,64], index: 2, kind: input, shape index: {}]
  %s3 = inlined_call_operand.<no memory space> [shape: bf16[], index: 3, kind: input, shape index: {}]
  %s4 = inlined_call_operand.vmem [shape: f32[2,32,32], index: 4, kind: output, shape index: {}]
  %s5 = sld [smem:[#allocation0]]
  $region45: #{clipseg_vision_embeddings.2} parent=0
    _
  %s7 = ssub.s32 1, %s5
  %s8 = scalar_select 0, %s7, %s5
  %v9 = vstv %s3
  %v10 = vunpack.i.l.bf16 %v9
  %v12 = vunpack.i.h.bf16 %v9
  loop: start=0, step=1, limit=6
  $region2: #{clipseg_vision_embeddings.2} parent=0 // loop_pre_header
    _
  $region3: #{clipseg_vision_embeddings.2} parent=0 // loop_header
    %s15 = sphi 0, %s19
    %p16 = scmp.ge.s32.totalorder %s15, 6
    %s22 = sphi 0, %s34
    %s23 = sphi 0, %s30
    %s24 = sphi 0, %s22
    %s25 = sphi 0, %s23
    %s26 = sphi 0, %s24
    %s27 = sphi 0, %s25
    %s39 = sphi 0, %s41
    %s42 = sphi 0, %s39
    %s43 = sphi 0, %s42
    %s59 = sphi 0, %s43
    %s63 = sphi 0, %s63
    %s65 = sphi 0, %s63
    %s66 = sphi 0, %s65
    %s80 = sphi 0, %s66
    %s86 = sphi 0, %s88
    %s89 = sphi 0, %s86
    %s90 = sphi 0, %s89
    %s106 = sphi 0, %s90
    %s114 = sphi 0, %s116
    %s117 = sphi 0, %s114
    %s118 = sphi 0, %s117
    %s134 = sphi 0, %s118
  $region4: #{clipseg_vision_embeddings.2} parent=0 // loop_header_branch
    %18 = sbr.rel (%p16) target = $region8
  $region5: #{clipseg_vision_embeddings.2} parent=0 // loop_body
    %s20 = ssub.s32 %s15, 1
    %s21 = ssub.s32 %s15, 2
    %s28 = sadd.s32 1, %s23
    %p29 = scmp.ge.s32.totalorder %s28, 2
    %s30 = scalar_select %p29, 0, %s28
    %s31 = sadd.s32 1, %s22
    %s32 = scalar_select %p29, %s31, %s22
    %p33 = scmp.ge.s32.totalorder %s32, 2
    %s34 = scalar_select %p33, 0, %s32
    %s35 = ssub.s32 %s23, %s30
    %s36 = ssub.s32 %s22, %s34
    %s37 = sor.u32 %s35, %s36
    %p38 = scmp.eq.s32.totalorder %s37, 0
    %s40 = sadd.s32 %s39, 1
    %s41 = scalar_select %p38, %s39, %s40
    %p44 = pneg %p38
    %p45 = scmp.eq.s32.totalorder %s15, 3
    %p46 = por %p44, %p45
    %p47 = scmp.ne.s32.totalorder %s39, %s42
    %p48 = scmp.eq.s32.totalorder %s15, 0
    %p49 = por %p47, %p48
    %p50 = scmp.ne.s32.totalorder %s39, %s42
    %p51 = scmp.eq.s32.totalorder %s20, 3
    %p52 = por %p50, %p51
    %p53 = scmp.ne.s32.totalorder %s42, %s43
    %p54 = scmp.eq.s32.totalorder %s20, 0
    %p55 = por %p53, %p54
    %p56 = scmp.ne.s32.totalorder %s42, %s43
    %p57 = scmp.eq.s32.totalorder %s21, 3
    %p58 = por %p56, %p57
    %p60 = scmp.ne.s32.totalorder %s43, %s59
    %p61 = scmp.eq.s32.totalorder %s21, 0
    %p62 = por %p60, %p61
    %s64 = sadd.s32 %s63, 1
    %p67 = scmp.eq.s32.totalorder %s15, 3
    %p68 = scmp.ne.s32.totalorder %s63, %s65
    %p69 = scmp.eq.s32.totalorder %s15, 0
    %p70 = por %p68, %p69
    %p71 = scmp.ne.s32.totalorder %s63, %s65
    %p72 = scmp.eq.s32.totalorder %s20, 3
    %p73 = por %p71, %p72
    %p74 = scmp.ne.s32.totalorder %s65, %s66
    %p75 = scmp.eq.s32.totalorder %s20, 0
    %p76 = por %p74, %p75
    %p77 = scmp.ne.s32.totalorder %s65, %s66
    %p78 = scmp.eq.s32.totalorder %s21, 3
    %p79 = por %p77, %p78
    %p81 = scmp.ne.s32.totalorder %s66, %s80
    %p82 = scmp.eq.s32.totalorder %s21, 0
    %p83 = por %p81, %p82
    %s84 = ssub.s32 %s22, %s34
    %p85 = scmp.eq.s32.totalorder %s84, 0
    %s87 = sadd.s32 %s86, 1
    %s88 = scalar_select %p85, %s86, %s87
    %p91 = pneg %p85
    %p92 = scmp.eq.s32.totalorder %s15, 3
    %p93 = por %p91, %p92
    %p94 = scmp.ne.s32.totalorder %s86, %s89
    %p95 = scmp.eq.s32.totalorder %s15, 0
    %p96 = por %p94, %p95
    %p97 = scmp.ne.s32.totalorder %s86, %s89
    %p98 = scmp.eq.s32.totalorder %s20, 3
    %p99 = por %p97, %p98
    %p100 = scmp.ne.s32.totalorder %s89, %s90
    %p101 = scmp.eq.s32.totalorder %s20, 0
    %p102 = por %p100, %p101
    %p103 = scmp.ne.s32.totalorder %s89, %s90
    %p104 = scmp.eq.s32.totalorder %s21, 3
    %p105 = por %p103, %p104
    %p107 = scmp.ne.s32.totalorder %s90, %s106
    %p108 = scmp.eq.s32.totalorder %s21, 0
    %p109 = por %p107, %p108
    %s110 = ssub.s32 %s23, %s30
    %s111 = ssub.s32 %s22, %s34
    %s112 = sor.u32 %s110, %s111
    %p113 = scmp.eq.s32.totalorder %s112, 0
    %s115 = sadd.s32 %s114, 1
    %s116 = scalar_select %p113, %s114, %s115
    %p119 = pneg %p113
    %p120 = scmp.eq.s32.totalorder %s15, 3
    %p121 = por %p119, %p120
    %p122 = scmp.ne.s32.totalorder %s114, %s117
    %p123 = scmp.eq.s32.totalorder %s15, 0
    %p124 = por %p122, %p123
    %p125 = scmp.ne.s32.totalorder %s114, %s117
    %p126 = scmp.eq.s32.totalorder %s20, 3
    %p127 = por %p125, %p126
    %p128 = scmp.ne.s32.totalorder %s117, %s118
    %p129 = scmp.eq.s32.totalorder %s20, 0
    %p130 = por %p128, %p129
    %p131 = scmp.ne.s32.totalorder %s117, %s118
    %p132 = scmp.eq.s32.totalorder %s21, 3
    %p133 = por %p131, %p132
    %p135 = scmp.ne.s32.totalorder %s118, %s134
    %p136 = scmp.eq.s32.totalorder %s21, 0
    %p137 = por %p135, %p136
    %p138 = scmp.le.s32.totalorder 1, %s15
    %p139 = scmp.lt.s32.totalorder %s15, 5
    %p140 = pnand %p138, %p139
    %p141 = pneg %p140
    // Predicated region
    $region9: #{clipseg_vision_embeddings.2} parent=5 // pred_check
      _
    $region10: #{clipseg_vision_embeddings.2} parent=5 // pred_check_branch
      %143 = sbr.rel (%p140) target = $region12
    $region11: #{clipseg_vision_embeddings.2} parent=5 // pred_region
      %s144 = ssub.s32 %s15, 1
      // Predicated region
      $region13: #{clipseg_vision_embeddings.2} parent=11 // pred_check
        %p145 = pneg %p76
      $region14: #{clipseg_vision_embeddings.2} parent=11 // pred_check_branch
        %147 = sbr.rel (%p145) target = $region16
      $region15: #{clipseg_vision_embeddings.2} parent=11 // pred_region
        _
      $region16: #{clipseg_vision_embeddings.2} parent=11 // pred_fallthru
        _
    $region12: #{clipseg_vision_embeddings.2} parent=5 // pred_fallthru
      _
    %p148 = scmp.lt.s32.totalorder %s15, 4
    // Predicated region
    $region17: #{clipseg_vision_embeddings.2} parent=5 // pred_check
      %p149 = pneg %p148
    $region18: #{clipseg_vision_embeddings.2} parent=5 // pred_check_branch
      %151 = sbr.rel (%p149) target = $region20
    $region19: #{clipseg_vision_embeddings.2} parent=5 // pred_region
      // Predicated region
      $region21: #{clipseg_vision_embeddings.2} parent=19 // pred_check
        %p152 = pneg %p49
      $region22: #{clipseg_vision_embeddings.2} parent=19 // pred_check_branch
        %154 = sbr.rel (%p152) target = $region24
      $region23: #{clipseg_vision_embeddings.2} parent=19 // pred_region
        %s155 = smul.u32 2, %s22
        %s156 = ssub.s32 1, %s155
        %p157 = scmp.gt.s32.totalorder %s156, 0
        %s158 = scalar_select %p157, %s156, 0
        %s159 = ssub.s32 3, %s155
        %s160 = ssub.s32 %s159, %s158
        %s161 = smul.u32 64, %s160
        %p162 = scmp.lt.s32.totalorder %s23, 1
        %s163 = scalar_select %p162, %s23, 1
        %s164 = ssub.s32 %s155, 1
        %p165 = scmp.lt.s32.totalorder %s164, 1
        %s166 = scalar_select %p165, %s164, 1
        %s167 = smul.addr %s163, 2
        %s168 = sadd.s32 %s166, %s167
        %s169 = smul.addr %s168, 4
        %s170 = scalar_lea.vmem %s2, %s169
        %s171 = smul.u32 2, %s22
        %s172 = ssub.s32 1, %s171
        %p173 = scmp.gt.s32.totalorder %s172, 0
        %s174 = scalar_select %p173, %s172, 0
        %s175 = ssub.s32 3, %s171
        %s176 = ssub.s32 %s175, %s174
        %s177 = smul.u32 64, %s176
      $region24: #{clipseg_vision_embeddings.2} parent=19 // pred_fallthru
        _
      // Predicated region
      $region25: #{clipseg_vision_embeddings.2} parent=19 // pred_check
        %p178 = pneg %p96
      $region26: #{clipseg_vision_embeddings.2} parent=19 // pred_check_branch
        %180 = sbr.rel (%p178) target = $region28
      $region27: #{clipseg_vision_embeddings.2} parent=19 // pred_region
        %s181 = smul.u32 2, %s22
        %p182 = scmp.lt.s32.totalorder %s181, 3
        %s183 = scalar_select %p182, %s181, 3
        %s184 = smul.addr %s183, 4
        %s185 = scalar_lea.vmem %s1, %s184
        %s186 = smul.u32 2, %s22
      $region28: #{clipseg_vision_embeddings.2} parent=19 // pred_fallthru
        _
    $region20: #{clipseg_vision_embeddings.2} parent=5 // pred_fallthru
      _
    %p187 = scmp.le.s32.totalorder 1, %s15
    %p188 = scmp.lt.s32.totalorder %s15, 5
    %p189 = pnand %p187, %p188
    %p190 = pneg %p189
    // Predicated region
    $region29: #{clipseg_vision_embeddings.2} parent=5 // pred_check
      _
    $region30: #{clipseg_vision_embeddings.2} parent=5 // pred_check_branch
      %192 = sbr.rel (%p189) target = $region32
    $region31: #{clipseg_vision_embeddings.2} parent=5 // pred_region
      #allocation7 [shape = 'u8[4096]{0}', space=vmem, size = 0x1000, dematerialized = true, scoped, tag = 'FusionAdapter Buffer %fusion.1 = bf16[2,32,64]{2,1,0:T(8,128)(2,1)} fusion(%param_2.1, %param_3), kind=kLoop, calls=%fused_computation.2.clone, metadata={op_name="jit(clipseg_vision_embeddings)/jit(_pad)/pad" stack_frame_id=12}']
      %s193 = ssub.s32 %s15, 1
      %s194 = smul.u32 2, %s24
      %s195 = ssub.s32 1, %s194
      %p196 = scmp.gt.s32.totalorder %s195, 0
      %s197 = scalar_select %p196, %s195, 0
      %s198 = ssub.s32 3, %s194
      %s199 = ssub.s32 %s198, %s197
      %s200 = smul.u32 64, %s199
      %p201 = scmp.lt.s32.totalorder %s25, 1
      %s202 = scalar_select %p201, %s25, 1
      %s203 = ssub.s32 %s194, 1
      %p204 = scmp.lt.s32.totalorder %s203, 1
      %s205 = scalar_select %p204, %s203, 1
      %s206 = smul.addr %s202, 2
      %s207 = sadd.s32 %s205, %s206
      %s208 = smul.addr %s207, 4
      %s209 = scalar_lea.vmem %s2, %s208
      %p210 = pneg %p55
      %p211 = pneg %p52
      %p212 = pneg %p76
      %p213 = pneg %p73
      %s214 = smul.u32 2, %s24
      %p215 = scmp.lt.s32.totalorder %s214, 3
      %s216 = scalar_select %p215, %s214, 3
      %s217 = smul.addr %s216, 4
      %s218 = scalar_lea.vmem %s1, %s217
      %p219 = pneg %p102
      %p220 = pneg %p99
      %p221 = pneg %p130
      %p222 = pneg %p127
      %s223 = smul.u32 2, %s24
      %p224 = scmp.lt.s32.totalorder %s25, 1
      %s225 = scalar_select %p224, %s25, 1
      %p226 = scmp.lt.s32.totalorder %s223, 3
      %s227 = scalar_select %p226, %s223, 3
      %s228 = smul.addr %s225, 4
      %s229 = sadd.s32 %s227, %s228
      %s230 = smul.addr %s229, 8
      %s231 = scalar_lea.vmem %s4, %s230
      %s232 = smul.u32 2, %s24
      %s233 = ssub.s32 1, %s232
      %p234 = scmp.gt.s32.totalorder %s233, 0
      %s235 = scalar_select %p234, %s233, 0
      %s236 = ssub.s32 3, %s232
      %s237 = ssub.s32 %s236, %s235
      %s238 = smul.u32 64, %s237
      %p239 = scmp.lt.s32.totalorder %s25, 1
      %s240 = scalar_select %p239, %s25, 1
      %s241 = ssub.s32 %s232, 1
      %p242 = scmp.lt.s32.totalorder %s241, 1
      %s243 = scalar_select %p242, %s241, 1
      %s244 = smul.addr %s240, 2
      %s245 = sadd.s32 %s243, %s244
      %s246 = smul.addr %s245, 4
      %s247 = scalar_lea.vmem %s2, %s246
      %s248 = smul.u32 2, %s24
      %s249 = ssub.s32 1, %s248
      %p250 = scmp.gt.s32.totalorder %s249, 0
      %s251 = scalar_select %p250, %s249, 0
      %s252 = ssub.s32 3, %s248
      %s253 = ssub.s32 %s252, %s251
      %s254 = smul.u32 64, %s253
      %s255 = smul.u32 2, %s24
      %p256 = scmp.lt.s32.totalorder %s255, 3
      %s257 = scalar_select %p256, %s255, 3
      %s258 = smul.addr %s257, 4
      %s259 = scalar_lea.vmem %s1, %s258
      %s260 = smul.u32 2, %s24
      %s261 = smul.u32 2, %s24
      %p262 = scmp.lt.s32.totalorder %s25, 1
      %s263 = scalar_select %p262, %s25, 1
      %p264 = scmp.lt.s32.totalorder %s261, 3
      %s265 = scalar_select %p264, %s261, 3
      %s266 = smul.addr %s263, 4
      %s267 = sadd.s32 %s265, %s266
      %s268 = smul.addr %s267, 8
      %s269 = scalar_lea.vmem %s4, %s268
      %s270 = smul.u32 2, %s24
      %s271 = ssub.s32 %s248, 1
      %s272 = ssub.s32 2, %s248
      %s273 = sor.u32 %s271, %s272
      %p274 = scmp.lt.s32.totalorder %s273, 0
      %s275 = scalar_select %p274, 0, 255
      %s276 = sshrl.u32 %s275, 1
      %s277 = sor.u32 %s275, %s276
      %s278 = sand.u32 %s277, 85
      %s279 = sshrl.u32 %s278, 1
      %s280 = sor.u32 %s278, %s279
      %s281 = sand.u32 51, %s280
      %s282 = sshrl.u32 %s281, 2
      %s283 = sor.u32 %s281, %s282
      %s284 = sand.u32 15, %s283
      %v285 = vld [vmem:[%s247] sm:%s284]
      %v286 = vunpack.c.l.bf16 %v285
      %v287 = vunpack.c.h.bf16 %v285
      %s288 = ssub.s32 %s248, 1
      %s289 = ssub.s32 2, %s248
      %s290 = sor.u32 %s288, %s289
      %v291 = vstv %s290
      %vm292 = vcmp.lt.s32.totalorder %v291, 0
      %v293 = vsel %vm292, %v10, %v286
      %v294 = vlaneseq
      %v295 = vand.u32 %v294, 127
      %vm297 = vcmp.lt.s32.totalorder %v295, 64
      %v298 = vsel %vm297, %v293, %v10
      %s299 = scalar_lea.vmem %s247, 4
      %s300 = sadd.s32 %s248, 1
      %s301 = ssub.s32 %s300, 1
      %s302 = ssub.s32 2, %s300
      %s303 = sor.u32 %s301, %s302
      %p304 = scmp.lt.s32.totalorder %s303, 0
      %s305 = scalar_select %p304, 0, 255
      %s306 = sshrl.u32 %s305, 1
      %s307 = sor.u32 %s305, %s306
      %s308 = sand.u32 %s307, 85
      %s309 = sshrl.u32 %s308, 1
      %s310 = sor.u32 %s308, %s309
      %s311 = sand.u32 51, %s310
      %s312 = sshrl.u32 %s311, 2
      %s313 = sor.u32 %s311, %s312
      %s314 = sand.u32 15, %s313
      %v315 = vld [vmem:[%s299] sm:%s314]
      %v316 = vunpack.c.l.bf16 %v315
      %v317 = vunpack.c.h.bf16 %v315
      %s318 = sadd.s32 %s248, 1
      %s319 = ssub.s32 %s318, 1
      %s320 = ssub.s32 2, %s318
      %s321 = sor.u32 %s319, %s320
      %v322 = vstv %s321
      %vm323 = vcmp.lt.s32.totalorder %v322, 0
      %v324 = vsel %vm323, %v10, %v316
      %v325 = vlaneseq
      %v326 = vand.u32 %v325, 127
      %vm328 = vcmp.lt.s32.totalorder %v326, 64
      %v329 = vsel %vm328, %v324, %v10
      %vm330 = vcmask 1046528
      %v331 = vsel %vm330, %v329, %v298
      %v332 = vrot.slane %v331, 7
      %v333 = vpack.c.bf16 0.0, %v332
      %335 = vst [vmem:[#allocation7] sm:$0xf] %v333
      %s336 = scalar_lea.vmem %s247, 8
      %s337 = sadd.s32 %s248, 2
      %s338 = ssub.s32 %s337, 1
      %s339 = ssub.s32 2, %s337
      %s340 = sor.u32 %s338, %s339
      %p341 = scmp.lt.s32.totalorder %s340, 0
      %s342 = scalar_select %p341, 0, 255
      %s343 = sshrl.u32 %s342, 1
      %s344 = sor.u32 %s342, %s343
      %s345 = sand.u32 %s344, 85
      %s346 = sshrl.u32 %s345, 1
      %s347 = sor.u32 %s345, %s346
      %s348 = sand.u32 51, %s347
      %s349 = sshrl.u32 %s348, 2
      %s350 = sor.u32 %s348, %s349
      %s351 = sand.u32 15, %s350
      %v352 = vld [vmem:[%s336] sm:%s351]
      %v353 = vunpack.c.l.bf16 %v352
      %v354 = vunpack.c.h.bf16 %v352
      %s355 = sadd.s32 %s248, 2
      %s356 = ssub.s32 %s355, 1
      %s357 = ssub.s32 2, %s355
      %s358 = sor.u32 %s356, %s357
      %v359 = vstv %s358
      %vm360 = vcmp.lt.s32.totalorder %v359, 0
      %v361 = vsel %vm360, %v10, %v353
      %v362 = vlaneseq
      %v363 = vand.u32 %v362, 127
      %vm365 = vcmp.lt.s32.totalorder %v363, 64
      %v366 = vsel %vm365, %v361, %v10
      %vm367 = vcmask 1046528
      %v368 = vsel %vm367, %v366, %v329
      %v369 = vrot.slane %v368, 7
      %s370 = scalar_lea.vmem [#allocation7], 4
      %v371 = vpack.c.bf16 0.0, %v369
      %373 = vst [vmem:[%s370] sm:$0xf] %v371
      %v375 = vld [vmem:[#allocation7] sm:$0xf]
      %v376 = vld [vmem:[#allocation7 + $0x4] sm:$0xf]
      %v377 = vld [vmem:[%s0] sm:$0xf]
      %v378 = vld [vmem:[%s0 + $0x4] sm:$0xf]
      %v379 = vld [vmem:[%s0 + $0x8] sm:$0xf]
      %v380 = vld [vmem:[%s0 + $0xc] sm:$0xf]
      %v381 = vld [vmem:[%s0 + $0x10] sm:$0xf]
      %v382 = vld [vmem:[%s0 + $0x14] sm:$0xf]
      %v383 = vld [vmem:[%s0 + $0x18] sm:$0xf]
      %v384 = vld [vmem:[%s0 + $0x1c] sm:$0xf]
      %v385 = vld [vmem:[%s259] sm:$0xf]
      %v386 = vld [vmem:[%s259 + $0x4] sm:$0xf]
      %v387 = vunpack.c.l.bf16 %v385
      %v388 = vunpack.c.l.bf16 %v386
      %v391 = vunpack.c.l.b16 %v375
      %v392 = vunpack.c.l.b16 %v376
      %v393 = vpack.c.b16 %v392, %v391
      %v402 = vunpack.c.l.b16 %v377
      %v403 = vunpack.c.l.b16 %v378
      %v404 = vunpack.c.l.b16 %v379
      %v405 = vunpack.c.l.b16 %v380
      %v406 = vunpack.c.l.b16 %v381
      %v407 = vunpack.c.l.b16 %v382
      %v408 = vunpack.c.l.b16 %v383
      %v409 = vunpack.c.l.b16 %v384
      %v410 = vpack.c.b16 %v403, %v402
      %v411 = vpack.c.b16 %v405, %v404
      %v412 = vpack.c.b16 %v407, %v406
      %v413 = vpack.c.b16 %v409, %v408
      %vm418 = vcmask 523264
      %v420 = vsel %vm418, %v393, 0
      %422 = vmatprep.subr.bf16.mxu0 0
      %423 = vmatpush1.bf16.msra.mxu0 %v410
      %424 = vmatprep.subr.bf16.mxu0 0
      %425 = vmatpush1.bf16.msra.mxu0 %v411
      %426 = vmatprep.subr.bf16.mxu0 0
      %427 = vmatpush1.bf16.msra.mxu0 %v412
      %428 = vmatprep.subr.bf16.mxu0 0
      %429 = vmatpush1.bf16.msra.mxu0 %v413
      %430 = vmatprep.subr.bf16.mxu0 0
      %431 = vmatpush1.bf16.msra.mxu0 0
      %432 = vmatprep.subr.bf16.mxu0 0
      %433 = vmatpush1.bf16.msra.mxu0 0
      %434 = vmatprep.subr.bf16.mxu0 0
      %435 = vmatpush1.bf16.msra.mxu0 0
      %436 = vmatprep.subr.bf16.mxu0 0
      %437 = vmatpush1.bf16.msra.mxu0 0
      %438 = vmatprep.subr.bf16.mxu0 0
      %439 = vmatpush1.bf16.msra.mxu0 0
      %440 = vmatprep.subr.bf16.mxu0 0
      %441 = vmatpush1.bf16.msra.mxu0 0
      %442 = vmatprep.subr.bf16.mxu0 0
      %443 = vmatpush1.bf16.msra.mxu0 0
      %444 = vmatprep.subr.bf16.mxu0 0
      %445 = vmatpush1.bf16.msra.mxu0 0
      %446 = vmatprep.subr.bf16.mxu0 0
      %447 = vmatpush1.bf16.msra.mxu0 0
      %448 = vmatprep.subr.bf16.mxu0 0
      %449 = vmatpush1.bf16.msra.mxu0 0
      %450 = vmatprep.subr.bf16.mxu0 0
      %451 = vmatpush1.bf16.msra.mxu0 0
      %452 = vmatprep.subr.bf16.mxu0 0
      %453 = vmatpush1.bf16.msra.mxu0 0
      %454 = vmatprep.mubr.bf16.mxu0 0
      %455 = vmatmul.mubr.bf16.gmra.mrb[0].mxu0 %v420
      %v456 = vpop.f32.mrb[0].mxu0
      %v457 = vadd.f32 %v387, %v456
      %v458 = vpop.f32.mrb[0].mxu0
      %v459 = vpop.f32.mrb[0].mxu0
      %v460 = vadd.f32 %v388, %v459
      %v461 = vpop.f32.mrb[0].mxu0
      %462 = vdwg.mxu0
      %vm463 = vcmask 261120
      %464 = vst.msk [vmem:[%s269] sm:$0xff] %vm463, %v457
      %465 = vst.msk [vmem:[%s269 + $0x8] sm:$0xff] %vm463, %v460
      %s466 = smul.u32 2, %s24
      %p467 = scmp.lt.s32.totalorder %s25, 1
      %s468 = scalar_select %p467, %s25, 1
      %p469 = scmp.lt.s32.totalorder %s466, 3
      %s470 = scalar_select %p469, %s466, 3
      %s471 = smul.addr %s468, 4
      %s472 = sadd.s32 %s470, %s471
      %s473 = smul.addr %s472, 8
      %s474 = scalar_lea.vmem %s4, %s473
      // Predicated region
      $region33: #{clipseg_vision_embeddings.2} parent=31 // pred_check
        %p475 = pneg %p127
      $region34: #{clipseg_vision_embeddings.2} parent=31 // pred_check_branch
        %477 = sbr.rel (%p475) target = $region36
      $region35: #{clipseg_vision_embeddings.2} parent=31 // pred_region
        %s478 = smul.u32 2, %s24
      $region36: #{clipseg_vision_embeddings.2} parent=31 // pred_fallthru
        _
    $region32: #{clipseg_vision_embeddings.2} parent=5 // pred_fallthru
      _
    %p479 = scmp.le.s32.totalorder 2, %s15
    // Predicated region
    $region37: #{clipseg_vision_embeddings.2} parent=5 // pred_check
      %p480 = pneg %p479
    $region38: #{clipseg_vision_embeddings.2} parent=5 // pred_check_branch
      %482 = sbr.rel (%p480) target = $region40
    $region39: #{clipseg_vision_embeddings.2} parent=5 // pred_region
      %s483 = ssub.s32 %s15, 2
      // Predicated region
      $region41: #{clipseg_vision_embeddings.2} parent=39 // pred_check
        %p484 = pneg %p133
      $region42: #{clipseg_vision_embeddings.2} parent=39 // pred_check_branch
        %486 = sbr.rel (%p484) target = $region44
      $region43: #{clipseg_vision_embeddings.2} parent=39 // pred_region
        %s487 = smul.u32 2, %s26
        %p488 = scmp.lt.s32.totalorder %s27, 1
        %s489 = scalar_select %p488, %s27, 1
        %p490 = scmp.lt.s32.totalorder %s487, 3
        %s491 = scalar_select %p490, %s487, 3
        %s492 = smul.addr %s489, 4
        %s493 = sadd.s32 %s491, %s492
        %s494 = smul.addr %s493, 8
        %s495 = scalar_lea.vmem %s4, %s494
      $region44: #{clipseg_vision_embeddings.2} parent=39 // pred_fallthru
        _
    $region40: #{clipseg_vision_embeddings.2} parent=5 // pred_fallthru
      _
  $region6: #{clipseg_vision_embeddings.2} parent=0 // loop_footer
    %s19 = sadd.s32 1, %s15
  $region7: #{clipseg_vision_embeddings.2} parent=0 // loop_footer_branch
    %14 = sbr.rel target = $region3
  $region8: #{clipseg_vision_embeddings.2} parent=0 // loop_exit
    _

</llo_original>
